<compile_context>
chip_gen: v7x
topology: tpu7x:2x2x1
jax: 0.10.0
libtpu: 0.0.40
codegen_flags: <defaults>
</compile_context>

<pallas_src>
import functools

import jax
import jax.numpy as jnp
from jax import lax
from jax.experimental import pallas as pl
from jax.experimental.pallas import tpu as pltpu


def _round_up(a: int, b: int) -> int:
    return (a + b - 1) // b * b


def _rms_pool_kernel(x_ref, o_ref, *, kernel_size, stride, pad_left,
                     mask_from_col):
    """One (row-tile, col-tile) step of RMS pooling.

    x_ref: (tm, tx) input columns feeding this output tile (native dtype).
    o_ref: (tm, tn) output tile (native dtype).

    The banded window matrix W[s, t] = 1/k iff
        t*stride - pad_left <= s < t*stride - pad_left + kernel_size
    is generated in-kernel from iotas (never touches HBM / resident VMEM).
    """
    x = x_ref[...].astype(jnp.float32)
    tm, tx = x.shape
    tn = o_ref.shape[-1]

    if mask_from_col is not None:
        # The last column tile may read past the end of the array; zero those
        # columns so stale/garbage VMEM contents can never pollute the sums
        # (0 * garbage inside the matmul would not be safe against NaN/Inf).
        col0 = pl.program_id(1) * tx
        cols = col0 + lax.broadcasted_iota(jnp.int32, (tm, tx), 1)
        x = jnp.where(cols < mask_from_col, x, jnp.float32(0.0))

    sq = x * x

    s_idx = lax.broadcasted_iota(jnp.int32, (tx, tn), 0)
    t_idx = lax.broadcasted_iota(jnp.int32, (tx, tn), 1)
    start = t_idx * stride - pad_left
    w = jnp.where((s_idx >= start) & (s_idx < start + kernel_size),
                  jnp.float32(1.0 / kernel_size), jnp.float32(0.0))

    sm = jnp.dot(sq, w, preferred_element_type=jnp.float32)
    o_ref[...] = jnp.sqrt(jnp.maximum(sm, jnp.float32(0.0))).astype(o_ref.dtype)


@functools.partial(jax.jit, static_argnames=("kernel_size", "stride", "padding"))
def rms_pool1d(x, kernel_size, stride=None, padding=0):
    """x: [B, C, T] -> [B, C, T_out] (RMS pooling, PyTorch avg_pool1d rules)."""
    stride = kernel_size if stride is None else stride
    if kernel_size <= 0 or stride <= 0:
        raise ValueError("kernel_size and stride must be positive")
    B, C, T = x.shape
    T_in = T + 2 * padding
    if T_in < kernel_size:
        raise ValueError("pooling window larger than (padded) input")
    T_out = (T_in - kernel_size) // stride + 1

    M = B * C
    x2d = x.reshape(M, T)                       # free (contiguous) reshape
    itemsize = jnp.dtype(x.dtype).itemsize

    # Row tile: full M when it fits (no partial row blocks), else 256.
    tm = M if M <= 256 else 256

    # Band-tile over T_out when windows do not overlap and T_out is long
    # enough to give at least one lane-dense (128-wide) column tile.
    tiled = (stride >= kernel_size) and (T_out >= 128)

    if tiled:
        T_cols = T + 2 * padding
        # Column tile: multiple of 128 (lane-dense, unmasked vst), <= T_out,
        # capped so one f32 x-block stays <= 2 MiB (double-buffered input +
        # in-kernel W/temporaries stay well inside v5e's 16 MiB scoped VMEM
        # and v7x's 64 MiB physical VMEM).
        tn = min(256, (T_out // 128) * 128)
        while tn > 128 and tm * tn * stride * 4 > (2 << 20):
            tn -= 128
        while tm > 8 and tm * tn * stride * 4 > (2 << 20):
            tm = _round_up(tm // 2, 8)
        tx = tn * stride
        if tx > T_cols:  # degenerate edge case: column block wider than input
            tiled = False

    if tiled:
        if padding > 0:
            # TODO(synk): fold the zero padding into a halo'd x BlockSpec to
            # avoid this single extra HBM copy (only taken when padding > 0).
            x2d = jnp.pad(x2d, ((0, 0), (padding, padding)))
        T_cols = x2d.shape[1]

        mask_from_col = T_cols if (T_cols % tx) != 0 else None
        kern = functools.partial(
            _rms_pool_kernel, kernel_size=kernel_size, stride=stride,
            pad_left=0, mask_from_col=mask_from_col)

        grid = (pl.cdiv(M, tm), pl.cdiv(T_out, tn))
        in_specs = [pl.BlockSpec((tm, tx), lambda i, j: (i, j))]
        out_specs = pl.BlockSpec((tm, tn), lambda i, j: (i, j))
        dims = ("parallel", "parallel")           # shards across v7x cores
        vmem_limit = 32 * 1024 * 1024
    else:
        # Overlapping windows / short outputs: one full-width column tile;
        # zero padding is folded into the in-kernel band condition (no pads,
        # no HBM W).
        # TODO(synk): halo-tiled column blocking for overlapping windows with
        # very long T (current fallback keeps the full T x T_out band in VMEM).
        T_cols = T
        kern = functools.partial(
            _rms_pool_kernel, kernel_size=kernel_size, stride=stride,
            pad_left=padding, mask_from_col=None)

        grid = (pl.cdiv(M, tm),)
        in_specs = [pl.BlockSpec((tm, T_cols), lambda i: (i, 0))]
        out_specs = pl.BlockSpec((tm, T_out), lambda i: (i, 0))
        dims = ("parallel",)
        est = (2 * tm * T_cols * itemsize + 2 * tm * T_out * itemsize
               + 2 * tm * T_cols * 4 + 3 * T_cols * T_out * 4 + tm * T_out * 4)
        vmem_limit = max(32 * 1024 * 1024, min(2 * est, 120 * 1024 * 1024))

    out = pl.pallas_call(
        kern,
        out_shape=jax.ShapeDtypeStruct((M, T_out), x.dtype),
        grid=grid,
        in_specs=in_specs,
        out_specs=out_specs,
        compiler_params=pltpu.CompilerParams(
            dimension_semantics=dims,
            vmem_limit_bytes=vmem_limit,
        ),
    )(x2d)

    return out.reshape(B, C, T_out)


def _reference(x, kernel_size, stride, padding):
    """Plain-JAX reference matching F.avg_pool1d(x**2, ...) then sqrt."""
    stride = kernel_size if stride is None else stride
    xs = x.astype(jnp.float32) ** 2
    summed = lax.reduce_window(
        xs, 0.0, lax.add,
        window_dimensions=(1, 1, kernel_size),
        window_strides=(1, 1, stride),
        padding=((0, 0), (0, 0), (padding, padding)))
    return jnp.sqrt(summed / kernel_size).astype(x.dtype)


if __name__ == "__main__":
    key = jax.random.PRNGKey(0)

    # Config 1: module defaults (stride = kernel_size, padding = 0), small.
    B, C, T = 2, 4, 16
    x = jax.random.normal(key, (B, C, T), dtype=jnp.float32)
    k1 = 4
    y1 = jax.block_until_ready(rms_pool1d(x, k1))
    r1 = _reference(x, k1, None, 0)
    assert y1.shape == r1.shape == (B, C, (T - k1) // k1 + 1), y1.shape
    assert jnp.allclose(y1, r1, atol=1e-5, rtol=1e-5), float(jnp.max(jnp.abs(y1 - r1)))

    # Config 2: overlapping windows with zero padding (fallback path).
    k2, s2, p2 = 5, 2, 2
    y2 = jax.block_until_ready(rms_pool1d(x, k2, stride=s2, padding=p2))
    r2 = _reference(x, k2, s2, p2)
    assert y2.shape == r2.shape, (y2.shape, r2.shape)
    assert jnp.allclose(y2, r2, atol=1e-5, rtol=1e-5), float(jnp.max(jnp.abs(y2 - r2)))

    # Config 3: longer sequence -> exercises the band-tiled 2-D grid path
    # (partial column tile + in-kernel OOB masking, T_out not a 128 multiple).
    B3, C3, T3, k3 = 2, 4, 1500, 4
    x3 = jax.random.normal(jax.random.PRNGKey(0), (B3, C3, T3), dtype=jnp.float32)
    y3 = jax.block_until_ready(rms_pool1d(x3, k3))
    r3 = _reference(x3, k3, None, 0)
    assert y3.shape == r3.shape == (B3, C3, (T3 - k3) // k3 + 1), y3.shape
    assert jnp.allclose(y3, r3, atol=1e-5, rtol=1e-5), float(jnp.max(jnp.abs(y3 - r3)))

    print("KERNEL_OK")
</pallas_src>

<mosaic_0001>
module attributes {stable_mosaic.version = 11 : i64} {
  func.func @_rms_pool_kernel(%arg0: i32, %arg1: memref<8x16xf32, #tpu.memory_space<vmem>>, %arg2: memref<8x4xf32, #tpu.memory_space<vmem>>) attributes {dimension_semantics = [#tpu.dimension_semantics<parallel>], iteration_bounds = array<i64: 1>, scalar_prefetch = 0 : i64, scratch_operands = 0 : i64, tpu.core_type = #tpu.core_type<tc>, window_params = [{transform_indices = @transform_0, window_bounds = array<i64: 8, 16>}, {transform_indices = @transform_1, window_bounds = array<i64: 8, 4>}]} {
    %c0 = arith.constant 0 : index
    %c0_0 = arith.constant 0 : index
    %0 = vector.load %arg1[%c0, %c0_0] : memref<8x16xf32, #tpu.memory_space<vmem>>, vector<8x16xf32>
    %1 = arith.mulf %0, %0 : vector<8x16xf32>
    %2 = tpu.iota {dimensions = array<i32: 0>} : vector<16x4xi32>
    %3 = tpu.iota {dimensions = array<i32: 1>} : vector<16x4xi32>
    %c4_i32 = arith.constant 4 : i32
    %4 = vector.broadcast %c4_i32 : i32 to vector<16x4xi32>
    %5 = arith.muli %3, %4 : vector<16x4xi32>
    %c0_i32 = arith.constant 0 : i32
    %6 = vector.broadcast %c0_i32 : i32 to vector<16x4xi32>
    %7 = arith.subi %5, %6 : vector<16x4xi32>
    %8 = arith.cmpi sge, %2, %7 : vector<16x4xi32>
    %c4_i32_1 = arith.constant 4 : i32
    %9 = vector.broadcast %c4_i32_1 : i32 to vector<16x4xi32>
    %10 = arith.addi %7, %9 : vector<16x4xi32>
    %11 = arith.cmpi slt, %2, %10 : vector<16x4xi32>
    %12 = arith.andi %8, %11 : vector<16x4xi1>
    %cst = arith.constant 2.500000e-01 : f32
    %cst_2 = arith.constant 0.000000e+00 : f32
    %13 = vector.broadcast %cst : f32 to vector<16x4xf32>
    %14 = vector.broadcast %cst_2 : f32 to vector<16x4xf32>
    %15 = arith.select %12, %13, %14 : vector<16x4xi1>, vector<16x4xf32>
    %cst_3 = arith.constant dense<0.000000e+00> : vector<8x4xf32>
    %16 = tpu.matmul %1, %15, %cst_3 {dimension_numbers = #tpu.dot_dimension_numbers<[1], [0], [0], [1], [0, 0, 1, 1], [], []>} : vector<8x16xf32>, vector<16x4xf32>, vector<8x4xf32> -> vector<8x4xf32>
    %cst_4 = arith.constant 0.000000e+00 : f32
    %17 = vector.broadcast %cst_4 : f32 to vector<8x4xf32>
    %18 = arith.maximumf %16, %17 : vector<8x4xf32>
    %19 = math.sqrt %18 : vector<8x4xf32>
    %c0_5 = arith.constant 0 : index
    %c0_6 = arith.constant 0 : index
    %20 = vector.load %arg2[%c0_5, %c0_6] : memref<8x4xf32, #tpu.memory_space<vmem>>, vector<8x4xf32>
    tpu.vector_store %arg2[%c0_5, %c0_6], %19 {strides = array<i32>} : memref<8x4xf32, #tpu.memory_space<vmem>>, vector<8x4xf32>,
    return
  }
  func.func @transform_0(%arg0: i32) -> (i32, i32) {
    %c0_i32 = arith.constant 0 : i32
    %c0_i32_0 = arith.constant 0 : i32
    return %arg0, %c0_i32 : i32, i32
  }
  func.func @transform_1(%arg0: i32) -> (i32, i32) {
    %c0_i32 = arith.constant 0 : i32
    %c0_i32_0 = arith.constant 0 : i32
    return %arg0, %c0_i32 : i32, i32
  }
}

</mosaic_0001>

<llo_original>
// kernel: rms_pool1d.1
$region0: #{rms_pool1d.1}
  #allocation0 [shape = 'u32[]', space=smem, size = 0x4, offset = 0x4, fixed_abs, tag = 'smem constant byte address 0x4 - core index']
  #allocation1 [shape = 'u32[144,128]{1,0:T(1,128)}', space=vmem, size = 0x12000, scoped, tag = 'internal scratch']
  %s0 = inlined_call_operand.hbm [shape: f32[8,16], index: 0, kind: input, shape index: {}]
  %s1 = inlined_call_operand.hbm [shape: f32[8,4], index: 1, kind: output, shape index: {}]
  %s2 = sld [smem:[#allocation0]]
  $region18: #{rms_pool1d.1} parent=0
    _
  %s4 = ssub.s32 1, %s2
  %s5 = scalar_select 0, %s4, %s2
  $region1: #{rms_pool1d.1} parent=0
    #allocation2 [shape = 'u8[4096]{0}', space=vmem, size = 0x1000, scoped, tag = 'input window, operand 0, single buffered']
    #allocation3 [shape = 's32[1]{0}', space=sflag, size = 0x4, scoped, tag = 'scoped memory for rms_pool1d.1']
    #allocation4 [shape = 's32[1]{0}', space=sflag, size = 0x4, scoped, tag = 'scoped memory for rms_pool1d.1']
    #allocation5 [shape = 'u8[4096]{0}', space=vmem, size = 0x1000, scoped, tag = 'output window, operand 0, single buffered']
    %6 = vsyncpa [#allocation3], 0
    %7 = vsyncpa [#allocation4], 0
    // Predicated region
    $region2: #{rms_pool1d.1} parent=1 // pred_check
      _
    $region3: #{rms_pool1d.1} parent=1 // pred_check_branch
      %9 = sbr.rel (0) target = $region5
    $region4: #{rms_pool1d.1} parent=1 // pred_region
      %s11 = ssub.s32 128, 128
      %12 = vsyncadd [#allocation3], %s11
      %s14 = sshll.u32 [#allocation2], 4
      %s15 = int_to_ptr.vmem [resolvable:$true] %s14
      %17 = dma.hbm_to_vmem [thread:$0]  %s0, 128, %s15, [#allocation3]
    $region5: #{rms_pool1d.1} parent=1 // pred_fallthru
      _
    // Predicated region
    $region6: #{rms_pool1d.1} parent=1 // pred_check
      _
    $region7: #{rms_pool1d.1} parent=1 // pred_check_branch
      %19 = sbr.rel (0) target = $region9
    $region8: #{rms_pool1d.1} parent=1 // pred_region
      %20 = dma.done [#allocation3], 128
    $region9: #{rms_pool1d.1} parent=1 // pred_fallthru
      _
    %v21 = vld [vmem:[#allocation2] sm:$0xff]
    %v22 = vmul.f32 %v21, %v21
    %v23 = vlaneseq
    %v24 = vshrl.u32 %v23, 7
    %v25 = vadd.s32 %v24, 8
    %v26 = vlaneseq
    %v27 = vand.u32 %v26, 127
    %v28 = vmul.u32 %v27, 4
    %vm29 = vcmp.ge.s32.totalorder %v24, %v28
    %vm30 = vcmp.ge.s32.totalorder %v25, %v28
    %v31 = vadd.s32 %v28, 4
    %vm32 = vcmp.lt.s32.totalorder %v24, %v31
    %vm33 = vcmp.lt.s32.totalorder %v25, %v31
    %vm34 = vmand %vm29, %vm32
    %vm35 = vmand %vm30, %vm33
    %v36 = vsel %vm34, 0.25, 0.0
    %v37 = vsel %vm35, 0.25, 0.0
    %vm38 = vcmask 130048
    %v40 = vsel %vm38, %v22, 0
    %42 = vmatprep.subr.mxu0 0.0
    %43 = vmatpush1.msra.mxu0 %v36
    %44 = vmatprep.subr.mxu0 0.0
    %45 = vmatpush1.msra.mxu0 %v37
    %46 = vmatprep.subr.mxu0 0.0
    %47 = vmatpush1.msra.mxu0 0.0
    %48 = vmatprep.subr.mxu0 0.0
    %49 = vmatpush1.msra.mxu0 0.0
    %50 = vmatprep.subr.mxu0 0.0
    %51 = vmatpush1.msra.mxu0 0.0
    %52 = vmatprep.subr.mxu0 0.0
    %53 = vmatpush1.msra.mxu0 0.0
    %54 = vmatprep.subr.mxu0 0.0
    %55 = vmatpush1.msra.mxu0 0.0
    %56 = vmatprep.subr.mxu0 0.0
    %57 = vmatpush1.msra.mxu0 0.0
    %58 = vmatprep.subr.mxu0 0.0
    %59 = vmatpush1.msra.mxu0 0.0
    %60 = vmatprep.subr.mxu0 0.0
    %61 = vmatpush1.msra.mxu0 0.0
    %62 = vmatprep.subr.mxu0 0.0
    %63 = vmatpush1.msra.mxu0 0.0
    %64 = vmatprep.subr.mxu0 0.0
    %65 = vmatpush1.msra.mxu0 0.0
    %66 = vmatprep.subr.mxu0 0.0
    %67 = vmatpush1.msra.mxu0 0.0
    %68 = vmatprep.subr.mxu0 0.0
    %69 = vmatpush1.msra.mxu0 0.0
    %70 = vmatprep.subr.mxu0 0.0
    %71 = vmatpush1.msra.mxu0 0.0
    %72 = vmatprep.subr.mxu0 0.0
    %73 = vmatpush1.msra.mxu0 0.0
    %74 = vmatprep.subr.mxu0 0.0
    %75 = vmatpush1.msra.mxu0 0.0
    %76 = vmatprep.subr.mxu0 0.0
    %77 = vmatpush1.msra.mxu0 0.0
    %78 = vmatprep.subr.mxu0 0.0
    %79 = vmatpush1.msra.mxu0 0.0
    %80 = vmatprep.subr.mxu0 0.0
    %81 = vmatpush1.msra.mxu0 0.0
    %82 = vmatprep.subr.mxu0 0.0
    %83 = vmatpush1.msra.mxu0 0.0
    %84 = vmatprep.subr.mxu0 0.0
    %85 = vmatpush1.msra.mxu0 0.0
    %86 = vmatprep.subr.mxu0 0.0
    %87 = vmatpush1.msra.mxu0 0.0
    %88 = vmatprep.subr.mxu0 0.0
    %89 = vmatpush1.msra.mxu0 0.0
    %90 = vmatprep.subr.mxu0 0.0
    %91 = vmatpush1.msra.mxu0 0.0
    %92 = vmatprep.subr.mxu0 0.0
    %93 = vmatpush1.msra.mxu0 0.0
    %94 = vmatprep.subr.mxu0 0.0
    %95 = vmatpush1.msra.mxu0 0.0
    %96 = vmatprep.subr.mxu0 0.0
    %97 = vmatpush1.msra.mxu0 0.0
    %98 = vmatprep.subr.mxu0 0.0
    %99 = vmatpush1.msra.mxu0 0.0
    %100 = vmatprep.subr.mxu0 0.0
    %101 = vmatpush1.msra.mxu0 0.0
    %102 = vmatprep.subr.mxu0 0.0
    %103 = vmatpush1.msra.mxu0 0.0
    %104 = vmatprep.subr.mxu0 0.0
    %105 = vmatpush1.msra.mxu0 0.0
    %106 = vmatprep.mubr.f32.mxu0 0.0
    %107 = vmatmul.mubr.f32.gmra.mrb[0].mxu0 %v40
    %v108 = vpop.f32.mrb[0].mxu0
    %v109 = vadd.f32 0.0, %v108
    %v110 = vpop.f32.mrb[0].mxu0
    %111 = vdwg.mxu0
    %v112 = vmax.f32 %v109, 0.0
    %v113 = vrsqrt.pop %v112
    %v114 = vmul.f32 %v112, %v113
    %vm115 = vcmp.eq.f32.partialorder %v112, inf
    %v116 = vsel %vm115, %v112, %v114
    %vm117 = vcmp.eq.f32.partialorder %v112, 0.0
    %v118 = vand.u32 %v112, 2147483648
    %v119 = vsel %vm117, %v118, %v116
    %vm120 = vcmask 31744
    %121 = vst.msk [vmem:[#allocation5] sm:$0xff] %vm120, %v119
    // Predicated region
    $region10: #{rms_pool1d.1} parent=1 // pred_check
      _
    $region11: #{rms_pool1d.1} parent=1 // pred_check_branch
      %123 = sbr.rel (0) target = $region13
    $region12: #{rms_pool1d.1} parent=1 // pred_region
      %s125 = ssub.s32 128, 128
      %126 = vsyncadd [#allocation4], %s125
      %s128 = sshll.u32 [#allocation5], 4
      %s129 = int_to_ptr.vmem [resolvable:$true] %s128
      %131 = dma.vmem_to_hbm [thread:$0]  %s129, 128, %s1, [#allocation4]
    $region13: #{rms_pool1d.1} parent=1 // pred_fallthru
      _
    // Predicated region
    $region14: #{rms_pool1d.1} parent=1 // pred_check
      _
    $region15: #{rms_pool1d.1} parent=1 // pred_check_branch
      %133 = sbr.rel (0) target = $region17
    $region16: #{rms_pool1d.1} parent=1 // pred_region
      %134 = dma.done [#allocation4], 128
    $region17: #{rms_pool1d.1} parent=1 // pred_fallthru
      _
    %135 = vsyncpa [#allocation3], 1
    %136 = vsyncpa [#allocation4], 1

</llo_original>
